<compile_context>
chip_gen: v5e
topology: v5e:2x2
jax: 0.10.0
libtpu: 0.0.40
codegen_flags: <defaults>
</compile_context>

<pallas_src>
import functools
from functools import partial

import numpy as np
import jax
import jax.numpy as jnp
from jax.experimental import pallas as pl
from jax.experimental.pallas import tpu as pltpu


def _round_up(x: int, m: int) -> int:
    return (x + m - 1) // m * m


@functools.lru_cache(maxsize=1)
def _vmem_capacity_bytes() -> int:
    try:
        return int(pltpu.get_tpu_info().vmem_capacity_bytes)
    except Exception:
        return 64 * 2**20  # conservative fallback (v7x per-TC VMEM)


def _const_block_spec(shape):
    """VMEM-resident block (same tile every grid step) -> single-buffered."""
    try:
        return pl.BlockSpec(shape, lambda i: (0, 0), pipeline_mode=pl.Buffered(1))
    except TypeError:  # older jax without pipeline_mode kwarg: default buffering
        return pl.BlockSpec(shape, lambda i: (0, 0))


def _make_mlp_kernel(num_layers: int, compute_dtype):
    """Fused kernel: (num_layers-1) x [Linear + ReLU], then the action head (logits)."""

    def kernel(*refs):
        x_ref = refs[0]
        out_ref = refs[-1]
        p = refs[1:-1]  # (w0, b0, ..., w_head, b_head); weights pre-transposed (in, out)

        h = x_ref[...].astype(compute_dtype)  # downcast (if any) happens in VMEM

        # Static Python unroll: shapes differ per layer, keeps LLO scheduling visibility.
        for i in range(num_layers - 1):
            acc = jnp.dot(h, p[2 * i][...], preferred_element_type=jnp.float32)
            acc = acc + p[2 * i + 1][...].astype(jnp.float32)   # f32 epilogue
            acc = jnp.maximum(acc, 0.0)
            h = acc.astype(compute_dtype)                        # downcast at boundary only

        logits = jnp.dot(h, p[-2][...], preferred_element_type=jnp.float32)
        logits = logits + p[-1][...].astype(jnp.float32)
        out_ref[...] = logits.astype(out_ref.dtype)

    return kernel


def pack_mlp_policy_params(params, param_dtype=jnp.bfloat16):
    """Pack PyTorch-convention params ONCE for the kernel (hoisted out of forward).

    params: list of (W (out_features, in_features), b (out_features,)) tuples,
            last entry is the action head.
    Returns (packed_arrays_tuple, out_dim).  Weights become (in, out), out dims
    zero-padded to a multiple of 128; the first layer's K dim stays un-padded so
    the raw observation tensor can be fed directly.
    """
    dtype = jnp.dtype(param_dtype)
    in_dim = params[0][0].shape[1]
    dims = [in_dim] + [w.shape[0] for w, _ in params]
    pdims = [in_dim] + [_round_up(d, 128) for d in dims[1:]]

    packed = []
    for li, (w, b) in enumerate(params):
        k_p, n_p = pdims[li], pdims[li + 1]
        wt = jnp.zeros((k_p, n_p), dtype)
        wt = wt.at[: w.shape[1], : w.shape[0]].set(jnp.asarray(w).T.astype(dtype))
        bp = jnp.zeros((1, n_p), dtype)
        bp = bp.at[0, : b.shape[0]].set(jnp.asarray(b).astype(dtype))
        packed += [wt, bp]
    return tuple(packed), params[-1][0].shape[0]


@partial(jax.jit, static_argnames=("out_dim", "tile_rows"))
def mlp_policy_forward(x, packed_params, *, out_dim, tile_rows=1024):
    """Forward pass of MLP_Policy. x: (batch, input_dim); packed_params from
    pack_mlp_policy_params(). Returns (batch, out_dim) logits in x.dtype."""
    packed_params = tuple(packed_params)
    num_layers = len(packed_params) // 2
    compute_dtype = packed_params[0].dtype
    batch, in_dim = x.shape
    assert packed_params[0].shape[0] == in_dim, "input_dim mismatch with packed params"
    pdims = [in_dim] + [packed_params[2 * i].shape[1] for i in range(num_layers)]
    out_p = pdims[-1]

    # Batch: pad rows only to a multiple of 8 (tiny copy when ragged); cdiv grid
    # lets Pallas mask any remaining partial last block.
    rows = _round_up(batch, 8)
    x_in = x if rows == batch else jnp.pad(x, ((0, rows - batch), (0, 0)))

    # Tile sizing: prefer >=2 grid steps (v7x 2-TC sharding) for small/medium
    # batches; otherwise a big tile amortizes per-grid-step overhead.
    tm_cap = max(8, _round_up(tile_rows, 8))
    if rows <= 2 * tm_cap:
        tm = max(8, _round_up(pl.cdiv(rows, 2), 8))
    else:
        tm = tm_cap
    tm = min(tm, rows)

    # VMEM accounting with real dtypes & buffer counts; generation-aware limit.
    c_size = jnp.dtype(compute_dtype).itemsize
    x_size = jnp.dtype(x.dtype).itemsize
    param_bytes = sum(int(p.size) * p.dtype.itemsize for p in packed_params)  # Buffered(1)
    max_p = max(pdims[1:])

    def vmem_need(t):
        x_tile = 2 * t * in_dim * x_size          # double-buffered input tile
        out_tile = 2 * t * out_p * 4              # double-buffered f32 output tile
        act = 2 * t * max_p * (4 + c_size)        # f32 acc + compute-dtype h (+ slack)
        return param_bytes + x_tile + out_tile + act + (2 << 20)

    budget = _vmem_capacity_bytes() - (8 << 20)   # headroom; v7x has only 64 MiB/TC
    while tm > 8 and vmem_need(tm) > budget:
        tm = max(8, _round_up(tm // 2, 8))
    # TODO(synk): for very large hidden dims where resident weights alone exceed the
    # v7x budget, tile K/N (extra grid axis or pltpu.emit_pipeline) instead of full
    # weight residency.
    vmem_limit = int(min(budget, max(32 << 20, vmem_need(tm))))

    grid = (pl.cdiv(rows, tm),)

    in_specs = [pl.BlockSpec((tm, in_dim), lambda i: (i, 0))]        # x tile (lane dim = full)
    for li in range(num_layers):
        in_specs.append(_const_block_spec(packed_params[2 * li].shape))      # resident weight
        in_specs.append(_const_block_spec(packed_params[2 * li + 1].shape))  # resident bias
    out_specs = pl.BlockSpec((tm, out_p), lambda i: (i, 0))           # lane-dense output

    n_rows = grid[0] * tm
    flops = 2 * n_rows * sum(a * b for a, b in zip(pdims[:-1], pdims[1:]))
    io_bytes = param_bytes + rows * in_dim * x_size + rows * out_p * 4

    out = pl.pallas_call(
        _make_mlp_kernel(num_layers, compute_dtype),
        out_shape=jax.ShapeDtypeStruct((rows, out_p), jnp.float32),
        grid=grid,
        in_specs=in_specs,
        out_specs=out_specs,
        compiler_params=pltpu.CompilerParams(
            dimension_semantics=("parallel",),
            vmem_limit_bytes=vmem_limit,
        ),
        cost_estimate=pl.CostEstimate(
            flops=flops, transcendentals=0, bytes_accessed=io_bytes
        ),
    )(x_in, *packed_params)

    # Slice real batch rows / real logits; match input dtype like nn.Linear.
    return out[:batch, :out_dim].astype(x.dtype)


def init_mlp_policy_params(key, input_dim, hidden_dims, output_dim, dtype=jnp.float32):
    """PyTorch nn.Linear default init: U[-1/sqrt(fan_in), 1/sqrt(fan_in)]."""
    dims = [input_dim] + list(hidden_dims) + [output_dim]
    params = []
    for in_d, out_d in zip(dims[:-1], dims[1:]):
        key, kw, kb = jax.random.split(key, 3)
        bound = 1.0 / float(np.sqrt(in_d))
        w = jax.random.uniform(kw, (out_d, in_d), dtype, minval=-bound, maxval=bound)
        b = jax.random.uniform(kb, (out_d,), dtype, minval=-bound, maxval=bound)
        params.append((w, b))
    return params


def mlp_policy_reference(x, params):
    """Exact float64 numpy reference for correctness checks."""
    h = np.asarray(x, np.float64)
    for w, b in params[:-1]:
        h = np.maximum(h @ np.asarray(w, np.float64).T + np.asarray(b, np.float64), 0.0)
    wh, bh = params[-1]
    return h @ np.asarray(wh, np.float64).T + np.asarray(bh, np.float64)


if __name__ == "__main__":
    # Small shapes consistent with the module: flat observations -> action logits.
    input_dim = 16
    hidden_dims = [32, 32]
    output_dim = 4

    root = jax.random.PRNGKey(0)
    kparams, kdata = jax.random.split(root)
    params = init_mlp_policy_params(kparams, input_dim, hidden_dims, output_dim)

    # Pack ONCE (this is what a PPO rollout loop reuses every step).
    packed_bf16, out_dim = pack_mlp_policy_params(params)                    # bf16 default
    packed_f32, _ = pack_mlp_policy_params(params, param_dtype=jnp.float32)  # f32 path

    for batch in (8, 12):  # 12 exercises the ragged-batch pad + 2-step grid
        kdata, kx = jax.random.split(kdata)
        x = jax.random.normal(kx, (batch, input_dim), dtype=jnp.float32)
        ref = mlp_policy_reference(x, params)

        # f32 param/compute path (tolerance covers MXU f32 matmul pass behavior).
        y32 = jax.block_until_ready(mlp_policy_forward(x, packed_f32, out_dim=out_dim))
        assert y32.shape == (batch, output_dim)
        assert np.allclose(np.asarray(y32, np.float64), ref, atol=5e-3, rtol=5e-3), \
            f"f32 mismatch vs reference (batch={batch})"

        # bf16 param/compute path (f32 accumulation): loose tolerance.
        ybf = jax.block_until_ready(mlp_policy_forward(x, packed_bf16, out_dim=out_dim))
        assert ybf.shape == (batch, output_dim)
        assert np.allclose(np.asarray(ybf, np.float64), ref, atol=1e-1, rtol=1e-1), \
            f"bf16 mismatch vs reference (batch={batch})"

    print("KERNEL_OK")
</pallas_src>

<mosaic_0001>
module attributes {stable_mosaic.version = 11 : i64} {
  func.func @kernel(%arg0: i32, %arg1: memref<8x16xf32, #tpu.memory_space<vmem>>, %arg2: memref<16x128xf32, #tpu.memory_space<vmem>>, %arg3: memref<1x128xf32, #tpu.memory_space<vmem>>, %arg4: memref<128x128xf32, #tpu.memory_space<vmem>>, %arg5: memref<1x128xf32, #tpu.memory_space<vmem>>, %arg6: memref<128x128xf32, #tpu.memory_space<vmem>>, %arg7: memref<1x128xf32, #tpu.memory_space<vmem>>, %arg8: memref<8x128xf32, #tpu.memory_space<vmem>>) attributes {dimension_semantics = [#tpu.dimension_semantics<parallel>], iteration_bounds = array<i64: 1>, scalar_prefetch = 0 : i64, scratch_operands = 0 : i64, tpu.core_type = #tpu.core_type<tc>, window_params = [{transform_indices = @transform_0, window_bounds = array<i64: 8, 16>}, {pipeline_mode = #tpu.pipeline_mode<synchronous>, transform_indices = @transform_1, window_bounds = array<i64: 16, 128>}, {pipeline_mode = #tpu.pipeline_mode<synchronous>, transform_indices = @transform_2, window_bounds = array<i64: 1, 128>}, {pipeline_mode = #tpu.pipeline_mode<synchronous>, transform_indices = @transform_3, window_bounds = array<i64: 128, 128>}, {pipeline_mode = #tpu.pipeline_mode<synchronous>, transform_indices = @transform_4, window_bounds = array<i64: 1, 128>}, {pipeline_mode = #tpu.pipeline_mode<synchronous>, transform_indices = @transform_5, window_bounds = array<i64: 128, 128>}, {pipeline_mode = #tpu.pipeline_mode<synchronous>, transform_indices = @transform_6, window_bounds = array<i64: 1, 128>}, {transform_indices = @transform_7, window_bounds = array<i64: 8, 128>}]} {
    %c0 = arith.constant 0 : index
    %c0_0 = arith.constant 0 : index
    %0 = vector.load %arg1[%c0, %c0_0] : memref<8x16xf32, #tpu.memory_space<vmem>>, vector<8x16xf32>
    %c0_1 = arith.constant 0 : index
    %c0_2 = arith.constant 0 : index
    %1 = vector.load %arg2[%c0_1, %c0_2] : memref<16x128xf32, #tpu.memory_space<vmem>>, vector<16x128xf32>
    %cst = arith.constant dense<0.000000e+00> : vector<8x128xf32>
    %2 = tpu.matmul %0, %1, %cst {dimension_numbers = #tpu.dot_dimension_numbers<[1], [0], [0], [1], [0, 0, 1, 1], [], []>} : vector<8x16xf32>, vector<16x128xf32>, vector<8x128xf32> -> vector<8x128xf32>
    %c0_3 = arith.constant 0 : index
    %c0_4 = arith.constant 0 : index
    %3 = vector.load %arg3[%c0_3, %c0_4] : memref<1x128xf32, #tpu.memory_space<vmem>>, vector<1x128xf32>
    %4 = vector.broadcast %3 : vector<1x128xf32> to vector<8x128xf32>
    %5 = arith.addf %2, %4 : vector<8x128xf32>
    %cst_5 = arith.constant 0.000000e+00 : f32
    %6 = vector.broadcast %cst_5 : f32 to vector<8x128xf32>
    %7 = arith.maximumf %5, %6 : vector<8x128xf32>
    %c0_6 = arith.constant 0 : index
    %c0_7 = arith.constant 0 : index
    %8 = vector.load %arg4[%c0_6, %c0_7] : memref<128x128xf32, #tpu.memory_space<vmem>>, vector<128x128xf32>
    %cst_8 = arith.constant dense<0.000000e+00> : vector<8x128xf32>
    %9 = tpu.matmul %7, %8, %cst_8 {dimension_numbers = #tpu.dot_dimension_numbers<[1], [0], [0], [1], [0, 0, 1, 1], [], []>} : vector<8x128xf32>, vector<128x128xf32>, vector<8x128xf32> -> vector<8x128xf32>
    %c0_9 = arith.constant 0 : index
    %c0_10 = arith.constant 0 : index
    %10 = vector.load %arg5[%c0_9, %c0_10] : memref<1x128xf32, #tpu.memory_space<vmem>>, vector<1x128xf32>
    %11 = vector.broadcast %10 : vector<1x128xf32> to vector<8x128xf32>
    %12 = arith.addf %9, %11 : vector<8x128xf32>
    %cst_11 = arith.constant 0.000000e+00 : f32
    %13 = vector.broadcast %cst_11 : f32 to vector<8x128xf32>
    %14 = arith.maximumf %12, %13 : vector<8x128xf32>
    %c0_12 = arith.constant 0 : index
    %c0_13 = arith.constant 0 : index
    %15 = vector.load %arg6[%c0_12, %c0_13] : memref<128x128xf32, #tpu.memory_space<vmem>>, vector<128x128xf32>
    %cst_14 = arith.constant dense<0.000000e+00> : vector<8x128xf32>
    %16 = tpu.matmul %14, %15, %cst_14 {dimension_numbers = #tpu.dot_dimension_numbers<[1], [0], [0], [1], [0, 0, 1, 1], [], []>} : vector<8x128xf32>, vector<128x128xf32>, vector<8x128xf32> -> vector<8x128xf32>
    %c0_15 = arith.constant 0 : index
    %c0_16 = arith.constant 0 : index
    %17 = vector.load %arg7[%c0_15, %c0_16] : memref<1x128xf32, #tpu.memory_space<vmem>>, vector<1x128xf32>
    %18 = vector.broadcast %17 : vector<1x128xf32> to vector<8x128xf32>
    %19 = arith.addf %16, %18 : vector<8x128xf32>
    %c0_17 = arith.constant 0 : index
    %c0_18 = arith.constant 0 : index
    %20 = vector.load %arg8[%c0_17, %c0_18] : memref<8x128xf32, #tpu.memory_space<vmem>>, vector<8x128xf32>
    tpu.vector_store %arg8[%c0_17, %c0_18], %19 {strides = array<i32>} : memref<8x128xf32, #tpu.memory_space<vmem>>, vector<8x128xf32>,
    return
  }
  func.func @transform_0(%arg0: i32) -> (i32, i32) {
    %c0_i32 = arith.constant 0 : i32
    %c0_i32_0 = arith.constant 0 : i32
    return %arg0, %c0_i32 : i32, i32
  }
  func.func @transform_1(%arg0: i32) -> (i32, i32) {
    %c0_i32 = arith.constant 0 : i32
    %c0_i32_0 = arith.constant 0 : i32
    %c0_i32_1 = arith.constant 0 : i32
    return %c0_i32, %c0_i32_0 : i32, i32
  }
  func.func @transform_2(%arg0: i32) -> (i32, i32) {
    %c0_i32 = arith.constant 0 : i32
    %c0_i32_0 = arith.constant 0 : i32
    %c0_i32_1 = arith.constant 0 : i32
    return %c0_i32, %c0_i32_0 : i32, i32
  }
  func.func @transform_3(%arg0: i32) -> (i32, i32) {
    %c0_i32 = arith.constant 0 : i32
    %c0_i32_0 = arith.constant 0 : i32
    %c0_i32_1 = arith.constant 0 : i32
    return %c0_i32, %c0_i32_0 : i32, i32
  }
  func.func @transform_4(%arg0: i32) -> (i32, i32) {
    %c0_i32 = arith.constant 0 : i32
    %c0_i32_0 = arith.constant 0 : i32
    %c0_i32_1 = arith.constant 0 : i32
    return %c0_i32, %c0_i32_0 : i32, i32
  }
  func.func @transform_5(%arg0: i32) -> (i32, i32) {
    %c0_i32 = arith.constant 0 : i32
    %c0_i32_0 = arith.constant 0 : i32
    %c0_i32_1 = arith.constant 0 : i32
    return %c0_i32, %c0_i32_0 : i32, i32
  }
  func.func @transform_6(%arg0: i32) -> (i32, i32) {
    %c0_i32 = arith.constant 0 : i32
    %c0_i32_0 = arith.constant 0 : i32
    %c0_i32_1 = arith.constant 0 : i32
    return %c0_i32, %c0_i32_0 : i32, i32
  }
  func.func @transform_7(%arg0: i32) -> (i32, i32) {
    %c0_i32 = arith.constant 0 : i32
    %c0_i32_0 = arith.constant 0 : i32
    return %arg0, %c0_i32 : i32, i32
  }
}

</mosaic_0001>

<llo_original>
// kernel: mlp_policy_forward.1
$region0: #{mlp_policy_forward.1}
  #allocation0 [shape = 'u32[]', space=smem, size = 0x4, offset = 0x4, fixed_abs, tag = 'smem constant byte address 0x4 - core index']
  #allocation1 [shape = 'u32[72,128]{1,0:T(1,128)}', space=vmem, size = 0x9000, scoped, tag = 'internal scratch']
  %s0 = inlined_call_operand.hbm [shape: f32[8,16], index: 0, kind: input, shape index: {}]
  %s1 = inlined_call_operand.hbm [shape: f32[16,128], index: 1, kind: input, shape index: {}]
  %s2 = inlined_call_operand.vmem [shape: f32[1,128], index: 2, kind: input, shape index: {}]
  %s3 = inlined_call_operand.hbm [shape: f32[128,128], index: 3, kind: input, shape index: {}]
  %s4 = inlined_call_operand.vmem [shape: f32[1,128], index: 4, kind: input, shape index: {}]
  %s5 = inlined_call_operand.hbm [shape: f32[128,128], index: 5, kind: input, shape index: {}]
  %s6 = inlined_call_operand.vmem [shape: f32[1,128], index: 6, kind: input, shape index: {}]
  %s7 = inlined_call_operand.vmem [shape: f32[8,128], index: 7, kind: output, shape index: {}]
  %s8 = sld [smem:[#allocation0]]
  $region54: #{mlp_policy_forward.1} parent=0
    _
  %s10 = ssub.s32 1, %s8
  %s11 = scalar_select 0, %s10, %s8
  $region1: #{mlp_policy_forward.1} parent=0
    #allocation2 [shape = 'u8[4096]{0}', space=vmem, size = 0x1000, scoped, tag = 'input window, operand 0, single buffered']
    #allocation3 [shape = 's32[1]{0}', space=sflag, size = 0x4, scoped, tag = 'scoped memory for mlp_policy_forward.1']
    #allocation4 [shape = 'u8[8192]{0}', space=vmem, size = 0x2000, scoped, tag = 'input window, operand 1, single buffered']
    #allocation5 [shape = 's32[1]{0}', space=sflag, size = 0x4, scoped, tag = 'scoped memory for mlp_policy_forward.1']
    #allocation6 [shape = 'u8[65536]{0}', space=vmem, size = 0x10000, scoped, tag = 'input window, operand 3, single buffered']
    #allocation7 [shape = 'u8[65536]{0}', space=vmem, size = 0x10000, scoped, tag = 'input window, operand 5, single buffered']
    #allocation8 [shape = 's32[1]{0}', space=sflag, size = 0x4, scoped, tag = 'scoped memory for mlp_policy_forward.1']
    %12 = vsyncpa [#allocation3], 0
    %13 = vsyncpa [#allocation5], 0
    %14 = vsyncpa [#allocation8], 0
    // Predicated region
    $region2: #{mlp_policy_forward.1} parent=1 // pred_check
      _
    $region3: #{mlp_policy_forward.1} parent=1 // pred_check_branch
      %16 = sbr.rel (0) target = $region5
    $region4: #{mlp_policy_forward.1} parent=1 // pred_region
      %18 = vsyncadd [#allocation3], 0
      %s20 = sshll.u32 %s0, 4
      %s21 = int_to_ptr.hbm [resolvable:$true] %s20
      %s22 = sshll.u32 [#allocation2], 4
      %s23 = int_to_ptr.vmem [resolvable:$true] %s22
      %25 = dma.hbm_to_vmem [thread:$0]  %s21, 128, %s23, [#allocation3]
    $region5: #{mlp_policy_forward.1} parent=1 // pred_fallthru
      _
    // Predicated region
    $region6: #{mlp_policy_forward.1} parent=1 // pred_check
      _
    $region7: #{mlp_policy_forward.1} parent=1 // pred_check_branch
      %27 = sbr.rel (0) target = $region9
    $region8: #{mlp_policy_forward.1} parent=1 // pred_region
      %29 = vsyncadd [#allocation5], 0
      %s30 = sshll.u32 %s1, 4
      %s31 = int_to_ptr.hbm [resolvable:$true] %s30
      %s32 = sshll.u32 [#allocation4], 4
      %s33 = int_to_ptr.vmem [resolvable:$true] %s32
      %38 = dma.hbm_to_vmem [thread:$0]  %s31, 256, %s33, [#allocation5], 128, 128, 8
    $region9: #{mlp_policy_forward.1} parent=1 // pred_fallthru
      _
    // Predicated region
    $region10: #{mlp_policy_forward.1} parent=1 // pred_check
      _
    $region11: #{mlp_policy_forward.1} parent=1 // pred_check_branch
      %40 = sbr.rel (0) target = $region13
    $region12: #{mlp_policy_forward.1} parent=1 // pred_region
      _
    $region13: #{mlp_policy_forward.1} parent=1 // pred_fallthru
      _
    // Predicated region
    $region14: #{mlp_policy_forward.1} parent=1 // pred_check
      _
    $region15: #{mlp_policy_forward.1} parent=1 // pred_check_branch
      %42 = sbr.rel (0) target = $region17
    $region16: #{mlp_policy_forward.1} parent=1 // pred_region
      %44 = vsyncadd [#allocation5], 0
      %s45 = sshll.u32 %s3, 4
      %s46 = int_to_ptr.hbm [resolvable:$true] %s45
      %s47 = sshll.u32 [#allocation6], 4
      %s48 = int_to_ptr.vmem [resolvable:$true] %s47
      %53 = dma.hbm_to_vmem [thread:$0]  %s46, 2048, %s48, [#allocation5], 128, 128, 8
    $region17: #{mlp_policy_forward.1} parent=1 // pred_fallthru
      _
    // Predicated region
    $region18: #{mlp_policy_forward.1} parent=1 // pred_check
      _
    $region19: #{mlp_policy_forward.1} parent=1 // pred_check_branch
      %55 = sbr.rel (0) target = $region21
    $region20: #{mlp_policy_forward.1} parent=1 // pred_region
      _
    $region21: #{mlp_policy_forward.1} parent=1 // pred_fallthru
      _
    // Predicated region
    $region22: #{mlp_policy_forward.1} parent=1 // pred_check
      _
    $region23: #{mlp_policy_forward.1} parent=1 // pred_check_branch
      %57 = sbr.rel (0) target = $region25
    $region24: #{mlp_policy_forward.1} parent=1 // pred_region
      %59 = vsyncadd [#allocation8], 0
      %s60 = sshll.u32 %s5, 4
      %s61 = int_to_ptr.hbm [resolvable:$true] %s60
      %s62 = sshll.u32 [#allocation7], 4
      %s63 = int_to_ptr.vmem [resolvable:$true] %s62
      %68 = dma.hbm_to_vmem [thread:$0]  %s61, 2048, %s63, [#allocation8], 128, 128, 8
    $region25: #{mlp_policy_forward.1} parent=1 // pred_fallthru
      _
    // Predicated region
    $region26: #{mlp_policy_forward.1} parent=1 // pred_check
      _
    $region27: #{mlp_policy_forward.1} parent=1 // pred_check_branch
      %70 = sbr.rel (0) target = $region29
    $region28: #{mlp_policy_forward.1} parent=1 // pred_region
      _
    $region29: #{mlp_policy_forward.1} parent=1 // pred_fallthru
      _
    // Predicated region
    $region30: #{mlp_policy_forward.1} parent=1 // pred_check
      _
    $region31: #{mlp_policy_forward.1} parent=1 // pred_check_branch
      %72 = sbr.rel (0) target = $region33
    $region32: #{mlp_policy_forward.1} parent=1 // pred_region
      %74 = dma.done [#allocation3], 128
    $region33: #{mlp_policy_forward.1} parent=1 // pred_fallthru
      _
    // Predicated region
    $region34: #{mlp_policy_forward.1} parent=1 // pred_check
      _
    $region35: #{mlp_policy_forward.1} parent=1 // pred_check_branch
      %76 = sbr.rel (0) target = $region37
    $region36: #{mlp_policy_forward.1} parent=1 // pred_region
      %78 = dma.done [#allocation5], 256
    $region37: #{mlp_policy_forward.1} parent=1 // pred_fallthru
      _
    // Predicated region
    $region38: #{mlp_policy_forward.1} parent=1 // pred_check
      _
    $region39: #{mlp_policy_forward.1} parent=1 // pred_check_branch
      %80 = sbr.rel (0) target = $region41
    $region40: #{mlp_policy_forward.1} parent=1 // pred_region
      %82 = dma.done [#allocation5], 2048
    $region41: #{mlp_policy_forward.1} parent=1 // pred_fallthru
      _
    // Predicated region
    $region42: #{mlp_policy_forward.1} parent=1 // pred_check
      _
    $region43: #{mlp_policy_forward.1} parent=1 // pred_check_branch
      %84 = sbr.rel (0) target = $region45
    $region44: #{mlp_policy_forward.1} parent=1 // pred_region
      %86 = dma.done [#allocation8], 2048
    $region45: #{mlp_policy_forward.1} parent=1 // pred_fallthru
      _
    %v87 = vld [vmem:[#allocation2] sm:$0xff]
    %v88 = vld [vmem:[#allocation4] sm:$0xff]
    %v89 = vld [vmem:[#allocation4 + $0x8] sm:$0xff]
    %v90 = vld [vmem:[%s2] sm:$0x1]
    %v92 = vperm.slane %v90, 0
    %vm94 = vcmask 130048
    %v96 = vsel %vm94, %v87, 0
    %98 = vmatpush.msra.mxu0 0.0
    %99 = vmatpush.msra.mxu0 0.0
    %100 = vmatpush.msra.mxu0 0.0
    %101 = vmatpush.msra.mxu0 0.0
    %102 = vmatpush.msra.mxu0 0.0
    %103 = vmatpush.msra.mxu0 0.0
    %104 = vmatpush.msra.mxu0 0.0
    %105 = vmatpush.msra.mxu0 0.0
    %106 = vmatpush.msra.mxu0 0.0
    %107 = vmatpush.msra.mxu0 0.0
    %108 = vmatpush.msra.mxu0 0.0
    %109 = vmatpush.msra.mxu0 0.0
    %110 = vmatpush.msra.mxu0 0.0
    %111 = vmatpush.msra.mxu0 0.0
    %112 = vmatpush.msra.mxu0 %v89
    %113 = vmatpush.msra.mxu0 %v88
    %114 = vmatmul.f32.gmra.mxu0 %v96
    %v115 = vpop.f32.mrf.mxu0
    %v116 = vadd.f32 %v92, %v115
    %117 = vdwg.mxu0
    %v118 = vmax.f32 %v116, 0.0
    %v119 = vld [vmem:[#allocation6] sm:$0xff]
    %v120 = vld [vmem:[#allocation6 + $0x8] sm:$0xff]
    %v121 = vld [vmem:[#allocation6 + $0x10] sm:$0xff]
    %v122 = vld [vmem:[#allocation6 + $0x18] sm:$0xff]
    %v123 = vld [vmem:[#allocation6 + $0x20] sm:$0xff]
    %v124 = vld [vmem:[#allocation6 + $0x28] sm:$0xff]
    %v125 = vld [vmem:[#allocation6 + $0x30] sm:$0xff]
    %v126 = vld [vmem:[#allocation6 + $0x38] sm:$0xff]
    %v127 = vld [vmem:[#allocation6 + $0x40] sm:$0xff]
    %v128 = vld [vmem:[#allocation6 + $0x48] sm:$0xff]
    %v129 = vld [vmem:[#allocation6 + $0x50] sm:$0xff]
    %v130 = vld [vmem:[#allocation6 + $0x58] sm:$0xff]
    %v131 = vld [vmem:[#allocation6 + $0x60] sm:$0xff]
    %v132 = vld [vmem:[#allocation6 + $0x68] sm:$0xff]
    %v133 = vld [vmem:[#allocation6 + $0x70] sm:$0xff]
    %v134 = vld [vmem:[#allocation6 + $0x78] sm:$0xff]
    %v135 = vld [vmem:[%s4] sm:$0x1]
    %v137 = vperm.slane %v135, 0
    %139 = vmatpush.msra.mxu0 %v134
    %140 = vmatpush.msra.mxu0 %v133
    %141 = vmatpush.msra.mxu0 %v132
    %142 = vmatpush.msra.mxu0 %v131
    %143 = vmatpush.msra.mxu0 %v130
    %144 = vmatpush.msra.mxu0 %v129
    %145 = vmatpush.msra.mxu0 %v128
    %146 = vmatpush.msra.mxu0 %v127
    %147 = vmatpush.msra.mxu0 %v126
    %148 = vmatpush.msra.mxu0 %v125
    %149 = vmatpush.msra.mxu0 %v124
    %150 = vmatpush.msra.mxu0 %v123
    %151 = vmatpush.msra.mxu0 %v122
    %152 = vmatpush.msra.mxu0 %v121
    %153 = vmatpush.msra.mxu0 %v120
    %154 = vmatpush.msra.mxu0 %v119
    %155 = vmatmul.f32.gmra.mxu0 %v118
    %v156 = vpop.f32.mrf.mxu0
    %v157 = vadd.f32 %v137, %v156
    %158 = vdwg.mxu0
    %v159 = vmax.f32 %v157, 0.0
    %v160 = vld [vmem:[#allocation7] sm:$0xff]
    %v161 = vld [vmem:[#allocation7 + $0x8] sm:$0xff]
    %v162 = vld [vmem:[#allocation7 + $0x10] sm:$0xff]
    %v163 = vld [vmem:[#allocation7 + $0x18] sm:$0xff]
    %v164 = vld [vmem:[#allocation7 + $0x20] sm:$0xff]
    %v165 = vld [vmem:[#allocation7 + $0x28] sm:$0xff]
    %v166 = vld [vmem:[#allocation7 + $0x30] sm:$0xff]
    %v167 = vld [vmem:[#allocation7 + $0x38] sm:$0xff]
    %v168 = vld [vmem:[#allocation7 + $0x40] sm:$0xff]
    %v169 = vld [vmem:[#allocation7 + $0x48] sm:$0xff]
    %v170 = vld [vmem:[#allocation7 + $0x50] sm:$0xff]
    %v171 = vld [vmem:[#allocation7 + $0x58] sm:$0xff]
    %v172 = vld [vmem:[#allocation7 + $0x60] sm:$0xff]
    %v173 = vld [vmem:[#allocation7 + $0x68] sm:$0xff]
    %v174 = vld [vmem:[#allocation7 + $0x70] sm:$0xff]
    %v175 = vld [vmem:[#allocation7 + $0x78] sm:$0xff]
    %v176 = vld [vmem:[%s6] sm:$0x1]
    %v178 = vperm.slane %v176, 0
    %180 = vmatpush.msra.mxu0 %v175
    %181 = vmatpush.msra.mxu0 %v174
    %182 = vmatpush.msra.mxu0 %v173
    %183 = vmatpush.msra.mxu0 %v172
    %184 = vmatpush.msra.mxu0 %v171
    %185 = vmatpush.msra.mxu0 %v170
    %186 = vmatpush.msra.mxu0 %v169
    %187 = vmatpush.msra.mxu0 %v168
    %188 = vmatpush.msra.mxu0 %v167
    %189 = vmatpush.msra.mxu0 %v166
    %190 = vmatpush.msra.mxu0 %v165
    %191 = vmatpush.msra.mxu0 %v164
    %192 = vmatpush.msra.mxu0 %v163
    %193 = vmatpush.msra.mxu0 %v162
    %194 = vmatpush.msra.mxu0 %v161
    %195 = vmatpush.msra.mxu0 %v160
    %196 = vmatmul.f32.gmra.mxu0 %v159
    %v197 = vpop.f32.mrf.mxu0
    %v198 = vadd.f32 %v178, %v197
    %199 = vdwg.mxu0
    %200 = vst [vmem:[%s7] sm:$0xff] %v198
    // Predicated region
    $region46: #{mlp_policy_forward.1} parent=1 // pred_check
      _
    $region47: #{mlp_policy_forward.1} parent=1 // pred_check_branch
      %202 = sbr.rel (0) target = $region49
    $region48: #{mlp_policy_forward.1} parent=1 // pred_region
      _
    $region49: #{mlp_policy_forward.1} parent=1 // pred_fallthru
      _
    // Predicated region
    $region50: #{mlp_policy_forward.1} parent=1 // pred_check
      _
    $region51: #{mlp_policy_forward.1} parent=1 // pred_check_branch
      %204 = sbr.rel (0) target = $region53
    $region52: #{mlp_policy_forward.1} parent=1 // pred_region
      _
    $region53: #{mlp_policy_forward.1} parent=1 // pred_fallthru
      _
    %205 = vsyncpa [#allocation3], 1
    %206 = vsyncpa [#allocation5], 1
    %207 = vsyncpa [#allocation8], 1

</llo_original>
